<compile_context>
chip_gen: v7x
topology: tpu7x:2x2x1
jax: 0.10.0
libtpu: 0.0.40
codegen_flags: <defaults>
</compile_context>

<pallas_src>
import jax
import jax.numpy as jnp
import numpy as np
from jax.experimental import pallas as pl
from jax.experimental.pallas import tpu as pltpu

H_PAD = 128  # hidden layers zero-padded to 128 columns -> lane-dense h1/h2


def _round_up(n, m):
    return ((n + m - 1) // m) * m


def mlp_kernel(x_ref, w1_ref, b1_ref, w2_ref, b2_ref, w3_ref, b3_ref, o_ref):
    # x arrives as f32 straight from HBM; cast to bf16 here (numerics documented
    # in one place).  MXU dots accumulate in f32; bias-add / ReLU run f32 on VPU.
    x = x_ref[...].astype(jnp.bfloat16)
    h1 = jnp.dot(x, w1_ref[...], preferred_element_type=jnp.float32)
    h1 = jnp.maximum(h1 + b1_ref[...], 0.0)
    h2 = jnp.dot(h1.astype(jnp.bfloat16), w2_ref[...], preferred_element_type=jnp.float32)
    h2 = jnp.maximum(h2 + b2_ref[...], 0.0)
    h3 = jnp.dot(h2.astype(jnp.bfloat16), w3_ref[...], preferred_element_type=jnp.float32)
    o_ref[...] = jnp.maximum(h3 + b3_ref[...], 0.0).astype(o_ref.dtype)


def _pick_batch_tile(B, F, tb_max=4096, x_budget_bytes=16 << 20):
    """Batch tile: big enough to amortize ~0.35us/grid-step overhead, small enough
    that the double-buffered f32 x tile fits the VMEM budget, capped so the grid
    has >=2 steps (both TensorCores on v7x / megacore) whenever B allows it."""
    b8 = _round_up(B, 8)
    tb = x_budget_bytes // (2 * F * 4)            # f32 x, double-buffered
    tb = max(8, min(int(tb), tb_max))
    tb = (tb // 8) * 8
    tb = min(tb, b8)
    if b8 >= 16 and tb >= b8:                     # keep at least 2 grid steps
        tb = max(8, _round_up((b8 + 1) // 2, 8))
    return tb


def nlinear_forward(x_nchw, params):
    """Forward pass of NLinearModels. x_nchw: (B, ...) float32 -> (B, n_out) float32."""
    B = x_nchw.shape[0]
    x_flat = x_nchw.reshape(B, -1)                # matches torch x.reshape(x.shape[0], -1)
    F = x_flat.shape[1]
    w1, b1, w2, b2, w3, b3 = params
    n_out = w3.shape[1]
    out_w = _round_up(n_out, 8)                   # narrow output block; also valid for n_out > 128

    # Zero-pad hidden layers to 128 cols (lane-dense h1/h2). Weights -> bf16 (tiny,
    # VMEM-resident); biases stay f32. Zero pads are exact and contribute nothing.
    w1p = jnp.pad(w1, ((0, 0), (0, H_PAD - w1.shape[1]))).astype(jnp.bfloat16)
    b1p = jnp.pad(b1, ((0, 0), (0, H_PAD - b1.shape[1])))
    w2p = jnp.pad(w2, ((0, H_PAD - w2.shape[0]), (0, H_PAD - w2.shape[1]))).astype(jnp.bfloat16)
    b2p = jnp.pad(b2, ((0, 0), (0, H_PAD - b2.shape[1])))
    w3p = jnp.pad(w3, ((0, H_PAD - w3.shape[0]), (0, out_w - n_out))).astype(jnp.bfloat16)
    b3p = jnp.pad(b3, ((0, 0), (0, out_w - n_out)))

    TB = _pick_batch_tile(B, F)
    grid = (pl.cdiv(B, TB),)                      # ragged last tile masked by Pallas; no x padding copy

    # Scoped-VMEM request derived from actual buffer bytes (never physical VMEM).
    weight_bytes = sum(int(a.size) * a.dtype.itemsize
                       for a in (w1p, b1p, w2p, b2p, w3p, b3p))
    need = (2 * TB * F * 4             # double-buffered f32 x tile
            + 2 * TB * out_w * 4       # double-buffered output tile
            + 2 * weight_bytes         # resident weights (conservatively x2)
            + 2 * TB * H_PAD * 4 * 2)  # f32 h1/h2 intermediates + slack
    vmem_limit = min(max(int(need * 1.25) + (1 << 20), 16 << 20), 32 << 20)
    # TODO(synk): for extremely large in_features (where even a TB=8 tile nears the
    # v7x 32 MiB scoped VMEM) add a K-axis grid over F with an f32 h1 accumulator.

    def const_spec(shape):  # whole array, resident across all grid steps
        return pl.BlockSpec(shape, lambda i: (0, 0))

    out = pl.pallas_call(
        mlp_kernel,
        out_shape=jax.ShapeDtypeStruct((B, out_w), jnp.float32),
        grid=grid,
        in_specs=[
            pl.BlockSpec((TB, F), lambda i: (i, 0)),   # x: streamed per batch tile
            const_spec(w1p.shape), const_spec(b1p.shape),
            const_spec(w2p.shape), const_spec(b2p.shape),
            const_spec(w3p.shape), const_spec(b3p.shape),
        ],
        out_specs=pl.BlockSpec((TB, out_w), lambda i: (i, 0)),
        compiler_params=pltpu.CompilerParams(
            dimension_semantics=("parallel",),
            vmem_limit_bytes=vmem_limit,
        ),
    )(x_flat, w1p, b1p, w2p, b2p, w3p, b3p)

    return out[:, :n_out]


def init_params(in_features, number_of_regressors=4, seed=0):
    """Deterministic init mimicking PyTorch nn.Linear default (U[-1/sqrt(fan_in), +1/sqrt(fan_in)]).
    Weights stored as (in_features, out_features), i.e. transposed relative to torch."""
    key = jax.random.PRNGKey(seed)
    dims = [(in_features, 64), (64, 16), (16, number_of_regressors)]
    params = []
    for (fan_in, fan_out) in dims:
        key, kw, kb = jax.random.split(key, 3)
        bound = 1.0 / np.sqrt(fan_in)
        w = jax.random.uniform(kw, (fan_in, fan_out), jnp.float32, -bound, bound)
        b = jax.random.uniform(kb, (1, fan_out), jnp.float32, -bound, bound)
        params += [w, b]
    return tuple(params)


def reference_forward(x_nchw, params):
    """Plain-JAX f32 reference (module semantics) for validation."""
    B = x_nchw.shape[0]
    x = x_nchw.reshape(B, -1)
    w1, b1, w2, b2, w3, b3 = params
    h1 = jnp.maximum(x @ w1 + b1, 0.0)
    h2 = jnp.maximum(h1 @ w2 + b2, 0.0)
    return jnp.maximum(h2 @ w3 + b3, 0.0)


if __name__ == "__main__":
    # Small shapes consistent with the module: per-example shape (4, 16, 16) -> in_features = 1024.
    B, C, H, W = 2, 4, 16, 16
    in_features = C * H * W

    key = jax.random.PRNGKey(0)
    x = jax.random.normal(key, (B, C, H, W), dtype=jnp.float32)

    params = init_params(in_features, number_of_regressors=4, seed=0)

    out = nlinear_forward(x, params)
    out = jax.block_until_ready(out)

    ref = reference_forward(x, params)
    assert out.shape == (B, 4), f"unexpected output shape {out.shape}"
    # Tolerance accounts for in-kernel bf16 operands (f32 accumulation retained).
    np.testing.assert_allclose(np.asarray(out), np.asarray(ref), rtol=2e-2, atol=2e-2)

    print("KERNEL_OK")
</pallas_src>

<mosaic_0001>
module attributes {stable_mosaic.version = 11 : i64} {
  func.func @mlp_kernel(%arg0: i32, %arg1: memref<8x1024xf32, #tpu.memory_space<vmem>>, %arg2: memref<1024x128xbf16, #tpu.memory_space<vmem>>, %arg3: memref<1x128xf32, #tpu.memory_space<vmem>>, %arg4: memref<128x128xbf16, #tpu.memory_space<vmem>>, %arg5: memref<1x128xf32, #tpu.memory_space<vmem>>, %arg6: memref<128x8xbf16, #tpu.memory_space<vmem>>, %arg7: memref<1x8xf32, #tpu.memory_space<vmem>>, %arg8: memref<8x8xf32, #tpu.memory_space<vmem>>) attributes {dimension_semantics = [#tpu.dimension_semantics<parallel>], iteration_bounds = array<i64: 1>, scalar_prefetch = 0 : i64, scratch_operands = 0 : i64, tpu.core_type = #tpu.core_type<tc>, window_params = [{transform_indices = @transform_0, window_bounds = array<i64: 8, 1024>}, {pipeline_mode = #tpu.pipeline_mode<synchronous>, transform_indices = @transform_1, window_bounds = array<i64: 1024, 128>}, {pipeline_mode = #tpu.pipeline_mode<synchronous>, transform_indices = @transform_2, window_bounds = array<i64: 1, 128>}, {pipeline_mode = #tpu.pipeline_mode<synchronous>, transform_indices = @transform_3, window_bounds = array<i64: 128, 128>}, {pipeline_mode = #tpu.pipeline_mode<synchronous>, transform_indices = @transform_4, window_bounds = array<i64: 1, 128>}, {pipeline_mode = #tpu.pipeline_mode<synchronous>, transform_indices = @transform_5, window_bounds = array<i64: 128, 8>}, {pipeline_mode = #tpu.pipeline_mode<synchronous>, transform_indices = @transform_6, window_bounds = array<i64: 1, 8>}, {transform_indices = @transform_7, window_bounds = array<i64: 8, 8>}]} {
    %c0 = arith.constant 0 : index
    %c0_0 = arith.constant 0 : index
    %0 = vector.load %arg1[%c0, %c0_0] : memref<8x1024xf32, #tpu.memory_space<vmem>>, vector<8x1024xf32>
    %1 = arith.truncf %0 : vector<8x1024xf32> to vector<8x1024xbf16>
    %c0_1 = arith.constant 0 : index
    %c0_2 = arith.constant 0 : index
    %2 = vector.load %arg2[%c0_1, %c0_2] : memref<1024x128xbf16, #tpu.memory_space<vmem>>, vector<1024x128xbf16>
    %cst = arith.constant dense<0.000000e+00> : vector<8x128xf32>
    %3 = tpu.matmul %1, %2, %cst {dimension_numbers = #tpu.dot_dimension_numbers<[1], [0], [0], [1], [0, 0, 1, 1], [], []>} : vector<8x1024xbf16>, vector<1024x128xbf16>, vector<8x128xf32> -> vector<8x128xf32>
    %c0_3 = arith.constant 0 : index
    %c0_4 = arith.constant 0 : index
    %4 = vector.load %arg3[%c0_3, %c0_4] : memref<1x128xf32, #tpu.memory_space<vmem>>, vector<1x128xf32>
    %5 = vector.broadcast %4 : vector<1x128xf32> to vector<8x128xf32>
    %6 = arith.addf %3, %5 : vector<8x128xf32>
    %cst_5 = arith.constant 0.000000e+00 : f32
    %7 = vector.broadcast %cst_5 : f32 to vector<8x128xf32>
    %8 = arith.maximumf %6, %7 : vector<8x128xf32>
    %9 = arith.truncf %8 : vector<8x128xf32> to vector<8x128xbf16>
    %c0_6 = arith.constant 0 : index
    %c0_7 = arith.constant 0 : index
    %10 = vector.load %arg4[%c0_6, %c0_7] : memref<128x128xbf16, #tpu.memory_space<vmem>>, vector<128x128xbf16>
    %cst_8 = arith.constant dense<0.000000e+00> : vector<8x128xf32>
    %11 = tpu.matmul %9, %10, %cst_8 {dimension_numbers = #tpu.dot_dimension_numbers<[1], [0], [0], [1], [0, 0, 1, 1], [], []>} : vector<8x128xbf16>, vector<128x128xbf16>, vector<8x128xf32> -> vector<8x128xf32>
    %c0_9 = arith.constant 0 : index
    %c0_10 = arith.constant 0 : index
    %12 = vector.load %arg5[%c0_9, %c0_10] : memref<1x128xf32, #tpu.memory_space<vmem>>, vector<1x128xf32>
    %13 = vector.broadcast %12 : vector<1x128xf32> to vector<8x128xf32>
    %14 = arith.addf %11, %13 : vector<8x128xf32>
    %cst_11 = arith.constant 0.000000e+00 : f32
    %15 = vector.broadcast %cst_11 : f32 to vector<8x128xf32>
    %16 = arith.maximumf %14, %15 : vector<8x128xf32>
    %17 = arith.truncf %16 : vector<8x128xf32> to vector<8x128xbf16>
    %c0_12 = arith.constant 0 : index
    %c0_13 = arith.constant 0 : index
    %18 = vector.load %arg6[%c0_12, %c0_13] : memref<128x8xbf16, #tpu.memory_space<vmem>>, vector<128x8xbf16>
    %cst_14 = arith.constant dense<0.000000e+00> : vector<8x8xf32>
    %19 = tpu.matmul %17, %18, %cst_14 {dimension_numbers = #tpu.dot_dimension_numbers<[1], [0], [0], [1], [0, 0, 1, 1], [], []>} : vector<8x128xbf16>, vector<128x8xbf16>, vector<8x8xf32> -> vector<8x8xf32>
    %c0_15 = arith.constant 0 : index
    %c0_16 = arith.constant 0 : index
    %20 = vector.load %arg7[%c0_15, %c0_16] : memref<1x8xf32, #tpu.memory_space<vmem>>, vector<1x8xf32>
    %21 = vector.broadcast %20 : vector<1x8xf32> to vector<8x8xf32>
    %22 = arith.addf %19, %21 : vector<8x8xf32>
    %cst_17 = arith.constant 0.000000e+00 : f32
    %23 = vector.broadcast %cst_17 : f32 to vector<8x8xf32>
    %24 = arith.maximumf %22, %23 : vector<8x8xf32>
    %c0_18 = arith.constant 0 : index
    %c0_19 = arith.constant 0 : index
    %25 = vector.load %arg8[%c0_18, %c0_19] : memref<8x8xf32, #tpu.memory_space<vmem>>, vector<8x8xf32>
    tpu.vector_store %arg8[%c0_18, %c0_19], %24 {strides = array<i32>} : memref<8x8xf32, #tpu.memory_space<vmem>>, vector<8x8xf32>,
    return
  }
  func.func @transform_0(%arg0: i32) -> (i32, i32) {
    %c0_i32 = arith.constant 0 : i32
    %c0_i32_0 = arith.constant 0 : i32
    return %arg0, %c0_i32 : i32, i32
  }
  func.func @transform_1(%arg0: i32) -> (i32, i32) {
    %c0_i32 = arith.constant 0 : i32
    %c0_i32_0 = arith.constant 0 : i32
    %c0_i32_1 = arith.constant 0 : i32
    return %c0_i32, %c0_i32_0 : i32, i32
  }
  func.func @transform_2(%arg0: i32) -> (i32, i32) {
    %c0_i32 = arith.constant 0 : i32
    %c0_i32_0 = arith.constant 0 : i32
    %c0_i32_1 = arith.constant 0 : i32
    return %c0_i32, %c0_i32_0 : i32, i32
  }
  func.func @transform_3(%arg0: i32) -> (i32, i32) {
    %c0_i32 = arith.constant 0 : i32
    %c0_i32_0 = arith.constant 0 : i32
    %c0_i32_1 = arith.constant 0 : i32
    return %c0_i32, %c0_i32_0 : i32, i32
  }
  func.func @transform_4(%arg0: i32) -> (i32, i32) {
    %c0_i32 = arith.constant 0 : i32
    %c0_i32_0 = arith.constant 0 : i32
    %c0_i32_1 = arith.constant 0 : i32
    return %c0_i32, %c0_i32_0 : i32, i32
  }
  func.func @transform_5(%arg0: i32) -> (i32, i32) {
    %c0_i32 = arith.constant 0 : i32
    %c0_i32_0 = arith.constant 0 : i32
    %c0_i32_1 = arith.constant 0 : i32
    return %c0_i32, %c0_i32_0 : i32, i32
  }
  func.func @transform_6(%arg0: i32) -> (i32, i32) {
    %c0_i32 = arith.constant 0 : i32
    %c0_i32_0 = arith.constant 0 : i32
    %c0_i32_1 = arith.constant 0 : i32
    return %c0_i32, %c0_i32_0 : i32, i32
  }
  func.func @transform_7(%arg0: i32) -> (i32, i32) {
    %c0_i32 = arith.constant 0 : i32
    %c0_i32_0 = arith.constant 0 : i32
    return %arg0, %c0_i32 : i32, i32
  }
}

</mosaic_0001>

<llo_original>
// kernel: tpu_custom_call.1
$region0: #{tpu_custom_call.1}
  #allocation0 [shape = 'u32[]', space=smem, size = 0x4, offset = 0x4, fixed_abs, tag = 'smem constant byte address 0x4 - core index']
  #allocation1 [shape = 'u32[144,128]{1,0:T(1,128)}', space=vmem, size = 0x12000, scoped, tag = 'internal scratch']
  %s0 = inlined_call_operand.hbm [shape: f32[2,1024], index: 0, kind: input, shape index: {}]
  %s1 = inlined_call_operand.hbm [shape: bf16[1024,128], index: 1, kind: input, shape index: {}]
  %s2 = inlined_call_operand.vmem [shape: f32[1,128], index: 2, kind: input, shape index: {}]
  %s3 = inlined_call_operand.vmem [shape: bf16[128,128], index: 3, kind: input, shape index: {}]
  %s4 = inlined_call_operand.vmem [shape: f32[1,128], index: 4, kind: input, shape index: {}]
  %s5 = inlined_call_operand.vmem [shape: bf16[128,8], index: 5, kind: input, shape index: {}]
  %s6 = inlined_call_operand.vmem [shape: f32[1,8], index: 6, kind: input, shape index: {}]
  %s7 = inlined_call_operand.hbm [shape: f32[2,8], index: 7, kind: output, shape index: {}]
  %s8 = sld [smem:[#allocation0]]
  $region46: #{tpu_custom_call.1} parent=0
    _
  %s10 = ssub.s32 1, %s8
  %s11 = scalar_select 0, %s10, %s8
  $region1: #{tpu_custom_call.1} parent=0
    #allocation2 [shape = 'u8[32768]{0}', space=vmem, size = 0x8000, scoped, tag = 'input window, operand 0, single buffered']
    #allocation3 [shape = 's32[1]{0}', space=sflag, size = 0x4, scoped, tag = 'scoped memory for tpu_custom_call.1']
    #allocation4 [shape = 's32[1]{0}', space=sflag, size = 0x4, scoped, tag = 'scoped memory for tpu_custom_call.1']
    #allocation5 [shape = 'u8[262144]{0}', space=vmem, size = 0x40000, scoped, tag = 'input window, operand 1, single buffered']
    #allocation6 [shape = 's32[1]{0}', space=sflag, size = 0x4, scoped, tag = 'scoped memory for tpu_custom_call.1']
    #allocation7 [shape = 'u8[4096]{0}', space=vmem, size = 0x1000, scoped, tag = 'output window, operand 0, single buffered']
    %12 = vsyncpa [#allocation3], 0
    %13 = vsyncpa [#allocation6], 0
    %14 = vsyncpa [#allocation4], 0
    // Predicated region
    $region2: #{tpu_custom_call.1} parent=1 // pred_check
      _
    $region3: #{tpu_custom_call.1} parent=1 // pred_check_branch
      %16 = sbr.rel (0) target = $region5
    $region4: #{tpu_custom_call.1} parent=1 // pred_region
      %s18 = ssub.s32 1024, 256
      %19 = vsyncadd [#allocation3], %s18
      %s20 = sshll.u32 [#allocation2], 4
      %s21 = int_to_ptr.vmem [resolvable:$true] %s20
      %26 = dma.hbm_to_vmem [thread:$0]  %s0, 256, %s21, [#allocation3], 256, 256, 16
    $region5: #{tpu_custom_call.1} parent=1 // pred_fallthru
      _
    // Predicated region
    $region6: #{tpu_custom_call.1} parent=1 // pred_check
      _
    $region7: #{tpu_custom_call.1} parent=1 // pred_check_branch
      %28 = sbr.rel (0) target = $region9
    $region8: #{tpu_custom_call.1} parent=1 // pred_region
      %s30 = ssub.s32 8192, 8192
      %31 = vsyncadd [#allocation6], %s30
      %s32 = sshll.u32 [#allocation5], 4
      %s33 = int_to_ptr.vmem [resolvable:$true] %s32
      %38 = dma.hbm_to_vmem [thread:$0]  %s1, 8192, %s33, [#allocation6], 64, 64, 4
    $region9: #{tpu_custom_call.1} parent=1 // pred_fallthru
      _
    // Predicated region
    $region10: #{tpu_custom_call.1} parent=1 // pred_check
      _
    $region11: #{tpu_custom_call.1} parent=1 // pred_check_branch
      %40 = sbr.rel (0) target = $region13
    $region12: #{tpu_custom_call.1} parent=1 // pred_region
      _
    $region13: #{tpu_custom_call.1} parent=1 // pred_fallthru
      _
    // Predicated region
    $region14: #{tpu_custom_call.1} parent=1 // pred_check
      _
    $region15: #{tpu_custom_call.1} parent=1 // pred_check_branch
      %42 = sbr.rel (0) target = $region17
    $region16: #{tpu_custom_call.1} parent=1 // pred_region
      _
    $region17: #{tpu_custom_call.1} parent=1 // pred_fallthru
      _
    // Predicated region
    $region18: #{tpu_custom_call.1} parent=1 // pred_check
      _
    $region19: #{tpu_custom_call.1} parent=1 // pred_check_branch
      %44 = sbr.rel (0) target = $region21
    $region20: #{tpu_custom_call.1} parent=1 // pred_region
      _
    $region21: #{tpu_custom_call.1} parent=1 // pred_fallthru
      _
    // Predicated region
    $region22: #{tpu_custom_call.1} parent=1 // pred_check
      _
    $region23: #{tpu_custom_call.1} parent=1 // pred_check_branch
      %46 = sbr.rel (0) target = $region25
    $region24: #{tpu_custom_call.1} parent=1 // pred_region
      _
    $region25: #{tpu_custom_call.1} parent=1 // pred_fallthru
      _
    // Predicated region
    $region26: #{tpu_custom_call.1} parent=1 // pred_check
      _
    $region27: #{tpu_custom_call.1} parent=1 // pred_check_branch
      %48 = sbr.rel (0) target = $region29
    $region28: #{tpu_custom_call.1} parent=1 // pred_region
      _
    $region29: #{tpu_custom_call.1} parent=1 // pred_fallthru
      _
    // Predicated region
    $region30: #{tpu_custom_call.1} parent=1 // pred_check
      _
    $region31: #{tpu_custom_call.1} parent=1 // pred_check_branch
      %50 = sbr.rel (0) target = $region33
    $region32: #{tpu_custom_call.1} parent=1 // pred_region
      %51 = dma.done [#allocation3], 1024
    $region33: #{tpu_custom_call.1} parent=1 // pred_fallthru
      _
    // Predicated region
    $region34: #{tpu_custom_call.1} parent=1 // pred_check
      _
    $region35: #{tpu_custom_call.1} parent=1 // pred_check_branch
      %53 = sbr.rel (0) target = $region37
    $region36: #{tpu_custom_call.1} parent=1 // pred_region
      %54 = dma.done [#allocation6], 8192
    $region37: #{tpu_custom_call.1} parent=1 // pred_fallthru
      _
    %v56 = vld [vmem:[#allocation2] sm:$0xff]
    %v57 = vld [vmem:[#allocation2 + $0x8] sm:$0xff]
    %v58 = vld [vmem:[#allocation2 + $0x10] sm:$0xff]
    %v59 = vld [vmem:[#allocation2 + $0x18] sm:$0xff]
    %v60 = vld [vmem:[#allocation2 + $0x20] sm:$0xff]
    %v61 = vld [vmem:[#allocation2 + $0x28] sm:$0xff]
    %v62 = vld [vmem:[#allocation2 + $0x30] sm:$0xff]
    %v63 = vld [vmem:[#allocation2 + $0x38] sm:$0xff]
    %v72 = vcombine.low %v56, %v58
    %v73 = vcombine.high %v56, %v58
    %v74 = vcombine.low %v60, %v62
    %v75 = vcombine.high %v60, %v62
    %v77 = vunpack.c.l.s4 1983009808
    %v78 = vunpack.c.0.s8 %v77
    %v79 = vlaneseq
    %v80 = vshrl.u32 %v79, 7
    %v81 = vsub.s32 %v78, %v80
    %v82 = vrot.slane %v72, %v81
    %v84 = vunpack.c.l.s4 1983009808
    %v85 = vunpack.c.0.s8 %v84
    %v86 = vlaneseq
    %v87 = vshrl.u32 %v86, 7
    %v88 = vsub.s32 %v85, %v87
    %v89 = vrot.slane %v73, %v88
    %v91 = vunpack.c.l.s4 1983009808
    %v92 = vunpack.c.0.s8 %v91
    %v93 = vlaneseq
    %v94 = vshrl.u32 %v93, 7
    %v95 = vsub.s32 %v92, %v94
    %v96 = vrot.slane %v74, %v95
    %v98 = vunpack.c.l.s4 1983009808
    %v99 = vunpack.c.0.s8 %v98
    %v100 = vlaneseq
    %v101 = vshrl.u32 %v100, 7
    %v102 = vsub.s32 %v99, %v101
    %v103 = vrot.slane %v75, %v102
    %v104 = vcombine.low %v82, %v96
    %v105 = vcombine.high %v82, %v96
    %v106 = vcombine.low %v89, %v103
    %v107 = vcombine.high %v89, %v103
    %v108 = vcombine.low %v57, %v59
    %v109 = vcombine.high %v57, %v59
    %v110 = vcombine.low %v61, %v63
    %v111 = vcombine.high %v61, %v63
    %v113 = vunpack.c.l.s4 1983009808
    %v114 = vunpack.c.0.s8 %v113
    %v115 = vlaneseq
    %v116 = vshrl.u32 %v115, 7
    %v117 = vsub.s32 %v114, %v116
    %v118 = vrot.slane %v108, %v117
    %v120 = vunpack.c.l.s4 1983009808
    %v121 = vunpack.c.0.s8 %v120
    %v122 = vlaneseq
    %v123 = vshrl.u32 %v122, 7
    %v124 = vsub.s32 %v121, %v123
    %v125 = vrot.slane %v109, %v124
    %v127 = vunpack.c.l.s4 1983009808
    %v128 = vunpack.c.0.s8 %v127
    %v129 = vlaneseq
    %v130 = vshrl.u32 %v129, 7
    %v131 = vsub.s32 %v128, %v130
    %v132 = vrot.slane %v110, %v131
    %v134 = vunpack.c.l.s4 1983009808
    %v135 = vunpack.c.0.s8 %v134
    %v136 = vlaneseq
    %v137 = vshrl.u32 %v136, 7
    %v138 = vsub.s32 %v135, %v137
    %v139 = vrot.slane %v111, %v138
    %v140 = vcombine.low %v118, %v132
    %v141 = vcombine.high %v118, %v132
    %v142 = vcombine.low %v125, %v139
    %v143 = vcombine.high %v125, %v139
    %v152 = vpack.c.bf16 %v104, %v104
    %v153 = vpack.c.bf16 %v105, %v105
    %v154 = vpack.c.bf16 %v106, %v106
    %v155 = vpack.c.bf16 %v107, %v107
    %v156 = vpack.c.bf16 %v140, %v140
    %v157 = vpack.c.bf16 %v141, %v141
    %v158 = vpack.c.bf16 %v142, %v142
    %v159 = vpack.c.bf16 %v143, %v143
    %v160 = vld [vmem:[#allocation5] sm:$0xf]
    %v161 = vld [vmem:[#allocation5 + $0x4] sm:$0xf]
    %v162 = vld [vmem:[#allocation5 + $0x8] sm:$0xf]
    %v163 = vld [vmem:[#allocation5 + $0xc] sm:$0xf]
    %v164 = vld [vmem:[#allocation5 + $0x10] sm:$0xf]
    %v165 = vld [vmem:[#allocation5 + $0x14] sm:$0xf]
    %v166 = vld [vmem:[#allocation5 + $0x18] sm:$0xf]
    %v167 = vld [vmem:[#allocation5 + $0x1c] sm:$0xf]
    %v168 = vld [vmem:[#allocation5 + $0x20] sm:$0xf]
    %v169 = vld [vmem:[#allocation5 + $0x24] sm:$0xf]
    %v170 = vld [vmem:[#allocation5 + $0x28] sm:$0xf]
    %v171 = vld [vmem:[#allocation5 + $0x2c] sm:$0xf]
    %v172 = vld [vmem:[#allocation5 + $0x30] sm:$0xf]
    %v173 = vld [vmem:[#allocation5 + $0x34] sm:$0xf]
    %v174 = vld [vmem:[#allocation5 + $0x38] sm:$0xf]
    %v175 = vld [vmem:[#allocation5 + $0x3c] sm:$0xf]
    %v176 = vld [vmem:[#allocation5 + $0x40] sm:$0xf]
    %v177 = vld [vmem:[#allocation5 + $0x44] sm:$0xf]
    %v178 = vld [vmem:[#allocation5 + $0x48] sm:$0xf]
    %v179 = vld [vmem:[#allocation5 + $0x4c] sm:$0xf]
    %v180 = vld [vmem:[#allocation5 + $0x50] sm:$0xf]
    %v181 = vld [vmem:[#allocation5 + $0x54] sm:$0xf]
    %v182 = vld [vmem:[#allocation5 + $0x58] sm:$0xf]
    %v183 = vld [vmem:[#allocation5 + $0x5c] sm:$0xf]
    %v184 = vld [vmem:[#allocation5 + $0x60] sm:$0xf]
    %v185 = vld [vmem:[#allocation5 + $0x64] sm:$0xf]
    %v186 = vld [vmem:[#allocation5 + $0x68] sm:$0xf]
    %v187 = vld [vmem:[#allocation5 + $0x6c] sm:$0xf]
    %v188 = vld [vmem:[#allocation5 + $0x70] sm:$0xf]
    %v189 = vld [vmem:[#allocation5 + $0x74] sm:$0xf]
    %v190 = vld [vmem:[#allocation5 + $0x78] sm:$0xf]
    %v191 = vld [vmem:[#allocation5 + $0x7c] sm:$0xf]
    %v192 = vld [vmem:[#allocation5 + $0x80] sm:$0xf]
    %v193 = vld [vmem:[#allocation5 + $0x84] sm:$0xf]
    %v194 = vld [vmem:[#allocation5 + $0x88] sm:$0xf]
    %v195 = vld [vmem:[#allocation5 + $0x8c] sm:$0xf]
    %v196 = vld [vmem:[#allocation5 + $0x90] sm:$0xf]
    %v197 = vld [vmem:[#allocation5 + $0x94] sm:$0xf]
    %v198 = vld [vmem:[#allocation5 + $0x98] sm:$0xf]
    %v199 = vld [vmem:[#allocation5 + $0x9c] sm:$0xf]
    %v200 = vld [vmem:[#allocation5 + $0xa0] sm:$0xf]
    %v201 = vld [vmem:[#allocation5 + $0xa4] sm:$0xf]
    %v202 = vld [vmem:[#allocation5 + $0xa8] sm:$0xf]
    %v203 = vld [vmem:[#allocation5 + $0xac] sm:$0xf]
    %v204 = vld [vmem:[#allocation5 + $0xb0] sm:$0xf]
    %v205 = vld [vmem:[#allocation5 + $0xb4] sm:$0xf]
    %v206 = vld [vmem:[#allocation5 + $0xb8] sm:$0xf]
    %v207 = vld [vmem:[#allocation5 + $0xbc] sm:$0xf]
    %v208 = vld [vmem:[#allocation5 + $0xc0] sm:$0xf]
    %v209 = vld [vmem:[#allocation5 + $0xc4] sm:$0xf]
    %v210 = vld [vmem:[#allocation5 + $0xc8] sm:$0xf]
    %v211 = vld [vmem:[#allocation5 + $0xcc] sm:$0xf]
    %v212 = vld [vmem:[#allocation5 + $0xd0] sm:$0xf]
    %v213 = vld [vmem:[#allocation5 + $0xd4] sm:$0xf]
    %v214 = vld [vmem:[#allocation5 + $0xd8] sm:$0xf]
    %v215 = vld [vmem:[#allocation5 + $0xdc] sm:$0xf]
    %v216 = vld [vmem:[#allocation5 + $0xe0] sm:$0xf]
    %v217 = vld [vmem:[#allocation5 + $0xe4] sm:$0xf]
    %v218 = vld [vmem:[#allocation5 + $0xe8] sm:$0xf]
    %v219 = vld [vmem:[#allocation5 + $0xec] sm:$0xf]
    %v220 = vld [vmem:[#allocation5 + $0xf0] sm:$0xf]
    %v221 = vld [vmem:[#allocation5 + $0xf4] sm:$0xf]
    %v222 = vld [vmem:[#allocation5 + $0xf8] sm:$0xf]
    %v223 = vld [vmem:[#allocation5 + $0xfc] sm:$0xf]
    %v224 = vld [vmem:[#allocation5 + $0x100] sm:$0xf]
    %v225 = vld [vmem:[#allocation5 + $0x104] sm:$0xf]
    %v226 = vld [vmem:[#allocation5 + $0x108] sm:$0xf]
    %v227 = vld [vmem:[#allocation5 + $0x10c] sm:$0xf]
    %v228 = vld [vmem:[#allocation5 + $0x110] sm:$0xf]
    %v229 = vld [vmem:[#allocation5 + $0x114] sm:$0xf]
    %v230 = vld [vmem:[#allocation5 + $0x118] sm:$0xf]
    %v231 = vld [vmem:[#allocation5 + $0x11c] sm:$0xf]
    %v232 = vld [vmem:[#allocation5 + $0x120] sm:$0xf]
    %v233 = vld [vmem:[#allocation5 + $0x124] sm:$0xf]
    %v234 = vld [vmem:[#allocation5 + $0x128] sm:$0xf]
    %v235 = vld [vmem:[#allocation5 + $0x12c] sm:$0xf]
    %v236 = vld [vmem:[#allocation5 + $0x130] sm:$0xf]
    %v237 = vld [vmem:[#allocation5 + $0x134] sm:$0xf]
    %v238 = vld [vmem:[#allocation5 + $0x138] sm:$0xf]
    %v239 = vld [vmem:[#allocation5 + $0x13c] sm:$0xf]
    %v240 = vld [vmem:[#allocation5 + $0x140] sm:$0xf]
    %v241 = vld [vmem:[#allocation5 + $0x144] sm:$0xf]
    %v242 = vld [vmem:[#allocation5 + $0x148] sm:$0xf]
    %v243 = vld [vmem:[#allocation5 + $0x14c] sm:$0xf]
    %v244 = vld [vmem:[#allocation5 + $0x150] sm:$0xf]
    %v245 = vld [vmem:[#allocation5 + $0x154] sm:$0xf]
    %v246 = vld [vmem:[#allocation5 + $0x158] sm:$0xf]
    %v247 = vld [vmem:[#allocation5 + $0x15c] sm:$0xf]
    %v248 = vld [vmem:[#allocation5 + $0x160] sm:$0xf]
    %v249 = vld [vmem:[#allocation5 + $0x164] sm:$0xf]
    %v250 = vld [vmem:[#allocation5 + $0x168] sm:$0xf]
    %v251 = vld [vmem:[#allocation5 + $0x16c] sm:$0xf]
    %v252 = vld [vmem:[#allocation5 + $0x170] sm:$0xf]
    %v253 = vld [vmem:[#allocation5 + $0x174] sm:$0xf]
    %v254 = vld [vmem:[#allocation5 + $0x178] sm:$0xf]
    %v255 = vld [vmem:[#allocation5 + $0x17c] sm:$0xf]
    %v256 = vld [vmem:[#allocation5 + $0x180] sm:$0xf]
    %v257 = vld [vmem:[#allocation5 + $0x184] sm:$0xf]
    %v258 = vld [vmem:[#allocation5 + $0x188] sm:$0xf]
    %v259 = vld [vmem:[#allocation5 + $0x18c] sm:$0xf]
    %v260 = vld [vmem:[#allocation5 + $0x190] sm:$0xf]
    %v261 = vld [vmem:[#allocation5 + $0x194] sm:$0xf]
    %v262 = vld [vmem:[#allocation5 + $0x198] sm:$0xf]
    %v263 = vld [vmem:[#allocation5 + $0x19c] sm:$0xf]
    %v264 = vld [vmem:[#allocation5 + $0x1a0] sm:$0xf]
    %v265 = vld [vmem:[#allocation5 + $0x1a4] sm:$0xf]
    %v266 = vld [vmem:[#allocation5 + $0x1a8] sm:$0xf]
    %v267 = vld [vmem:[#allocation5 + $0x1ac] sm:$0xf]
    %v268 = vld [vmem:[#allocation5 + $0x1b0] sm:$0xf]
    %v269 = vld [vmem:[#allocation5 + $0x1b4] sm:$0xf]
    %v270 = vld [vmem:[#allocation5 + $0x1b8] sm:$0xf]
    %v271 = vld [vmem:[#allocation5 + $0x1bc] sm:$0xf]
    %v272 = vld [vmem:[#allocation5 + $0x1c0] sm:$0xf]
    %v273 = vld [vmem:[#allocation5 + $0x1c4] sm:$0xf]
    %v274 = vld [vmem:[#allocation5 + $0x1c8] sm:$0xf]
    %v275 = vld [vmem:[#allocation5 + $0x1cc] sm:$0xf]
    %v276 = vld [vmem:[#allocation5 + $0x1d0] sm:$0xf]
    %v277 = vld [vmem:[#allocation5 + $0x1d4] sm:$0xf]
    %v278 = vld [vmem:[#allocation5 + $0x1d8] sm:$0xf]
    %v279 = vld [vmem:[#allocation5 + $0x1dc] sm:$0xf]
    %v280 = vld [vmem:[#allocation5 + $0x1e0] sm:$0xf]
    %v281 = vld [vmem:[#allocation5 + $0x1e4] sm:$0xf]
    %v282 = vld [vmem:[#allocation5 + $0x1e8] sm:$0xf]
    %v283 = vld [vmem:[#allocation5 + $0x1ec] sm:$0xf]
    %v284 = vld [vmem:[#allocation5 + $0x1f0] sm:$0xf]
    %v285 = vld [vmem:[#allocation5 + $0x1f4] sm:$0xf]
    %v286 = vld [vmem:[#allocation5 + $0x1f8] sm:$0xf]
    %v287 = vld [vmem:[#allocation5 + $0x1fc] sm:$0xf]
    %v288 = vld [vmem:[%s2] sm:$0x1]
    %v290 = vlaneseq
    %v291 = vshrl.u32 %v290, 7
    %v292 = vsub.s32 0, %v291
    %v293 = vrot.slane %v288, %v292
    %v423 = vunpack.c.l.b16 %v160
    %v424 = vunpack.c.l.b16 %v161
    %v425 = vunpack.c.l.b16 %v162
    %v426 = vunpack.c.l.b16 %v163
    %v427 = vunpack.c.l.b16 %v164
    %v428 = vunpack.c.l.b16 %v165
    %v429 = vunpack.c.l.b16 %v166
    %v430 = vunpack.c.l.b16 %v167
    %v431 = vunpack.c.l.b16 %v168
    %v432 = vunpack.c.l.b16 %v169
    %v433 = vunpack.c.l.b16 %v170
    %v434 = vunpack.c.l.b16 %v171
    %v435 = vunpack.c.l.b16 %v172
    %v436 = vunpack.c.l.b16 %v173
    %v437 = vunpack.c.l.b16 %v174
    %v438 = vunpack.c.l.b16 %v175
    %v439 = vunpack.c.l.b16 %v176
    %v440 = vunpack.c.l.b16 %v177
    %v441 = vunpack.c.l.b16 %v178
    %v442 = vunpack.c.l.b16 %v179
    %v443 = vunpack.c.l.b16 %v180
    %v444 = vunpack.c.l.b16 %v181
    %v445 = vunpack.c.l.b16 %v182
    %v446 = vunpack.c.l.b16 %v183
    %v447 = vunpack.c.l.b16 %v184
    %v448 = vunpack.c.l.b16 %v185
    %v449 = vunpack.c.l.b16 %v186
    %v450 = vunpack.c.l.b16 %v187
    %v451 = vunpack.c.l.b16 %v188
    %v452 = vunpack.c.l.b16 %v189
    %v453 = vunpack.c.l.b16 %v190
    %v454 = vunpack.c.l.b16 %v191
    %v455 = vunpack.c.l.b16 %v192
    %v456 = vunpack.c.l.b16 %v193
    %v457 = vunpack.c.l.b16 %v194
    %v458 = vunpack.c.l.b16 %v195
    %v459 = vunpack.c.l.b16 %v196
    %v460 = vunpack.c.l.b16 %v197
    %v461 = vunpack.c.l.b16 %v198
    %v462 = vunpack.c.l.b16 %v199
    %v463 = vunpack.c.l.b16 %v200
    %v464 = vunpack.c.l.b16 %v201
    %v465 = vunpack.c.l.b16 %v202
    %v466 = vunpack.c.l.b16 %v203
    %v467 = vunpack.c.l.b16 %v204
    %v468 = vunpack.c.l.b16 %v205
    %v469 = vunpack.c.l.b16 %v206
    %v470 = vunpack.c.l.b16 %v207
    %v471 = vunpack.c.l.b16 %v208
    %v472 = vunpack.c.l.b16 %v209
    %v473 = vunpack.c.l.b16 %v210
    %v474 = vunpack.c.l.b16 %v211
    %v475 = vunpack.c.l.b16 %v212
    %v476 = vunpack.c.l.b16 %v213
    %v477 = vunpack.c.l.b16 %v214
    %v478 = vunpack.c.l.b16 %v215
    %v479 = vunpack.c.l.b16 %v216
    %v480 = vunpack.c.l.b16 %v217
    %v481 = vunpack.c.l.b16 %v218
    %v482 = vunpack.c.l.b16 %v219
    %v483 = vunpack.c.l.b16 %v220
    %v484 = vunpack.c.l.b16 %v221
    %v485 = vunpack.c.l.b16 %v222
    %v486 = vunpack.c.l.b16 %v223
    %v487 = vunpack.c.l.b16 %v224
    %v488 = vunpack.c.l.b16 %v225
    %v489 = vunpack.c.l.b16 %v226
    %v490 = vunpack.c.l.b16 %v227
    %v491 = vunpack.c.l.b16 %v228
    %v492 = vunpack.c.l.b16 %v229
    %v493 = vunpack.c.l.b16 %v230
    %v494 = vunpack.c.l.b16 %v231
    %v495 = vunpack.c.l.b16 %v232
    %v496 = vunpack.c.l.b16 %v233
    %v497 = vunpack.c.l.b16 %v234
    %v498 = vunpack.c.l.b16 %v235
    %v499 = vunpack.c.l.b16 %v236
    %v500 = vunpack.c.l.b16 %v237
    %v501 = vunpack.c.l.b16 %v238
    %v502 = vunpack.c.l.b16 %v239
    %v503 = vunpack.c.l.b16 %v240
    %v504 = vunpack.c.l.b16 %v241
    %v505 = vunpack.c.l.b16 %v242
    %v506 = vunpack.c.l.b16 %v243
    %v507 = vunpack.c.l.b16 %v244
    %v508 = vunpack.c.l.b16 %v245
    %v509 = vunpack.c.l.b16 %v246
    %v510 = vunpack.c.l.b16 %v247
    %v511 = vunpack.c.l.b16 %v248
    %v512 = vunpack.c.l.b16 %v249
    %v513 = vunpack.c.l.b16 %v250
    %v514 = vunpack.c.l.b16 %v251
    %v515 = vunpack.c.l.b16 %v252
    %v516 = vunpack.c.l.b16 %v253
    %v517 = vunpack.c.l.b16 %v254
    %v518 = vunpack.c.l.b16 %v255
    %v519 = vunpack.c.l.b16 %v256
    %v520 = vunpack.c.l.b16 %v257
    %v521 = vunpack.c.l.b16 %v258
    %v522 = vunpack.c.l.b16 %v259
    %v523 = vunpack.c.l.b16 %v260
    %v524 = vunpack.c.l.b16 %v261
    %v525 = vunpack.c.l.b16 %v262
    %v526 = vunpack.c.l.b16 %v263
    %v527 = vunpack.c.l.b16 %v264
    %v528 = vunpack.c.l.b16 %v265
    %v529 = vunpack.c.l.b16 %v266
    %v530 = vunpack.c.l.b16 %v267
    %v531 = vunpack.c.l.b16 %v268
    %v532 = vunpack.c.l.b16 %v269
    %v533 = vunpack.c.l.b16 %v270
    %v534 = vunpack.c.l.b16 %v271
    %v535 = vunpack.c.l.b16 %v272
    %v536 = vunpack.c.l.b16 %v273
    %v537 = vunpack.c.l.b16 %v274
    %v538 = vunpack.c.l.b16 %v275
    %v539 = vunpack.c.l.b16 %v276
    %v540 = vunpack.c.l.b16 %v277
    %v541 = vunpack.c.l.b16 %v278
    %v542 = vunpack.c.l.b16 %v279
    %v543 = vunpack.c.l.b16 %v280
    %v544 = vunpack.c.l.b16 %v281
    %v545 = vunpack.c.l.b16 %v282
    %v546 = vunpack.c.l.b16 %v283
    %v547 = vunpack.c.l.b16 %v284
    %v548 = vunpack.c.l.b16 %v285
    %v549 = vunpack.c.l.b16 %v286
    %v550 = vunpack.c.l.b16 %v287
    %v551 = vpack.c.b16 %v424, %v423
    %v552 = vpack.c.b16 %v426, %v425
    %v553 = vpack.c.b16 %v428, %v427
    %v554 = vpack.c.b16 %v430, %v429
    %v555 = vpack.c.b16 %v432, %v431
    %v556 = vpack.c.b16 %v434, %v433
    %v557 = vpack.c.b16 %v436, %v435
    %v558 = vpack.c.b16 %v438, %v437
    %v559 = vpack.c.b16 %v440, %v439
    %v560 = vpack.c.b16 %v442, %v441
    %v561 = vpack.c.b16 %v444, %v443
    %v562 = vpack.c.b16 %v446, %v445
    %v563 = vpack.c.b16 %v448, %v447
    %v564 = vpack.c.b16 %v450, %v449
    %v565 = vpack.c.b16 %v452, %v451
    %v566 = vpack.c.b16 %v454, %v453
    %v567 = vpack.c.b16 %v456, %v455
    %v568 = vpack.c.b16 %v458, %v457
    %v569 = vpack.c.b16 %v460, %v459
    %v570 = vpack.c.b16 %v462, %v461
    %v571 = vpack.c.b16 %v464, %v463
    %v572 = vpack.c.b16 %v466, %v465
    %v573 = vpack.c.b16 %v468, %v467
    %v574 = vpack.c.b16 %v470, %v469
    %v575 = vpack.c.b16 %v472, %v471
    %v576 = vpack.c.b16 %v474, %v473
    %v577 = vpack.c.b16 %v476, %v475
    %v578 = vpack.c.b16 %v478, %v477
    %v579 = vpack.c.b16 %v480, %v479
    %v580 = vpack.c.b16 %v482, %v481
    %v581 = vpack.c.b16 %v484, %v483
    %v582 = vpack.c.b16 %v486, %v485
    %v583 = vpack.c.b16 %v488, %v487
    %v584 = vpack.c.b16 %v490, %v489
    %v585 = vpack.c.b16 %v492, %v491
    %v586 = vpack.c.b16 %v494, %v493
    %v587 = vpack.c.b16 %v496, %v495
    %v588 = vpack.c.b16 %v498, %v497
    %v589 = vpack.c.b16 %v500, %v499
    %v590 = vpack.c.b16 %v502, %v501
    %v591 = vpack.c.b16 %v504, %v503
    %v592 = vpack.c.b16 %v506, %v505
    %v593 = vpack.c.b16 %v508, %v507
    %v594 = vpack.c.b16 %v510, %v509
    %v595 = vpack.c.b16 %v512, %v511
    %v596 = vpack.c.b16 %v514, %v513
    %v597 = vpack.c.b16 %v516, %v515
    %v598 = vpack.c.b16 %v518, %v517
    %v599 = vpack.c.b16 %v520, %v519
    %v600 = vpack.c.b16 %v522, %v521
    %v601 = vpack.c.b16 %v524, %v523
    %v602 = vpack.c.b16 %v526, %v525
    %v603 = vpack.c.b16 %v528, %v527
    %v604 = vpack.c.b16 %v530, %v529
    %v605 = vpack.c.b16 %v532, %v531
    %v606 = vpack.c.b16 %v534, %v533
    %v607 = vpack.c.b16 %v536, %v535
    %v608 = vpack.c.b16 %v538, %v537
    %v609 = vpack.c.b16 %v540, %v539
    %v610 = vpack.c.b16 %v542, %v541
    %v611 = vpack.c.b16 %v544, %v543
    %v612 = vpack.c.b16 %v546, %v545
    %v613 = vpack.c.b16 %v548, %v547
    %v614 = vpack.c.b16 %v550, %v549
    %679 = vmatprep.subr.bf16.mxu0 0
    %680 = vmatpush1.bf16.msra.mxu0 %v551
    %681 = vmatprep.subr.bf16.mxu0 0
    %682 = vmatpush1.bf16.msra.mxu0 %v552
    %683 = vmatprep.subr.bf16.mxu0 0
    %684 = vmatpush1.bf16.msra.mxu0 %v553
    %685 = vmatprep.subr.bf16.mxu0 0
    %686 = vmatpush1.bf16.msra.mxu0 %v554
    %687 = vmatprep.subr.bf16.mxu0 0
    %688 = vmatpush1.bf16.msra.mxu0 %v555
    %689 = vmatprep.subr.bf16.mxu0 0
    %690 = vmatpush1.bf16.msra.mxu0 %v556
    %691 = vmatprep.subr.bf16.mxu0 0
    %692 = vmatpush1.bf16.msra.mxu0 %v557
    %693 = vmatprep.subr.bf16.mxu0 0
    %694 = vmatpush1.bf16.msra.mxu0 %v558
    %695 = vmatprep.subr.bf16.mxu0 0
    %696 = vmatpush1.bf16.msra.mxu0 %v559
    %697 = vmatprep.subr.bf16.mxu0 0
    %698 = vmatpush1.bf16.msra.mxu0 %v560
    %699 = vmatprep.subr.bf16.mxu0 0
    %700 = vmatpush1.bf16.msra.mxu0 %v561
    %701 = vmatprep.subr.bf16.mxu0 0
    %702 = vmatpush1.bf16.msra.mxu0 %v562
    %703 = vmatprep.subr.bf16.mxu0 0
    %704 = vmatpush1.bf16.msra.mxu0 %v563
    %705 = vmatprep.subr.bf16.mxu0 0
    %706 = vmatpush1.bf16.msra.mxu0 %v564
    %707 = vmatprep.subr.bf16.mxu0 0
    %708 = vmatpush1.bf16.msra.mxu0 %v565
    %709 = vmatprep.subr.bf16.mxu0 0
    %710 = vmatpush1.bf16.msra.mxu0 %v566
    %711 = vmatprep.mubr.bf16.mxu0 %v153
    %712 = vmatmul.mubr.bf16.gmra.mrb[0].mxu0 %v152
    %v713 = vpop.f32.mrb[0].mxu0
    %v714 = vadd.f32 %v293, %v713
    %v715 = vpop.f32.mrb[0].mxu0
    %v716 = vpop.f32.mrb[0].mxu0
    %v717 = vpop.f32.mrb[0].mxu0
    %718 = vdwg.mxu0
    %719 = vmatprep.subr.bf16.mxu0 0
    %720 = vmatpush1.bf16.msra.mxu0 %v567
    %721 = vmatprep.subr.bf16.mxu0 0
    %722 = vmatpush1.bf16.msra.mxu0 %v568
    %723 = vmatprep.subr.bf16.mxu0 0
    %724 = vmatpush1.bf16.msra.mxu0 %v569
    %725 = vmatprep.subr.bf16.mxu0 0
    %726 = vmatpush1.bf16.msra.mxu0 %v570
    %727 = vmatprep.subr.bf16.mxu0 0
    %728 = vmatpush1.bf16.msra.mxu0 %v571
    %729 = vmatprep.subr.bf16.mxu0 0
    %730 = vmatpush1.bf16.msra.mxu0 %v572
    %731 = vmatprep.subr.bf16.mxu0 0
    %732 = vmatpush1.bf16.msra.mxu0 %v573
    %733 = vmatprep.subr.bf16.mxu0 0
    %734 = vmatpush1.bf16.msra.mxu0 %v574
    %735 = vmatprep.subr.bf16.mxu0 0
    %736 = vmatpush1.bf16.msra.mxu0 %v575
    %737 = vmatprep.subr.bf16.mxu0 0
    %738 = vmatpush1.bf16.msra.mxu0 %v576
    %739 = vmatprep.subr.bf16.mxu0 0
    %740 = vmatpush1.bf16.msra.mxu0 %v577
    %741 = vmatprep.subr.bf16.mxu0 0
    %742 = vmatpush1.bf16.msra.mxu0 %v578
    %743 = vmatprep.subr.bf16.mxu0 0
    %744 = vmatpush1.bf16.msra.mxu0 %v579
    %745 = vmatprep.subr.bf16.mxu0 0
    %746 = vmatpush1.bf16.msra.mxu0 %v580
    %747 = vmatprep.subr.bf16.mxu0 0
    %748 = vmatpush1.bf16.msra.mxu0 %v581
    %749 = vmatprep.subr.bf16.mxu0 0
    %750 = vmatpush1.bf16.msra.mxu0 %v582
    %751 = vmatprep.mubr.bf16.mxu0 %v155
    %752 = vmatmul.mubr.bf16.gmra.mrb[0].mxu0 %v154
    %v753 = vpop.f32.mrb[0].mxu0
    %v754 = vadd.f32 %v714, %v753
    %v755 = vpop.f32.mrb[0].mxu0
    %v756 = vpop.f32.mrb[0].mxu0
    %v757 = vpop.f32.mrb[0].mxu0
    %758 = vdwg.mxu0
    %759 = vmatprep.subr.bf16.mxu0 0
    %760 = vmatpush1.bf16.msra.mxu0 %v583
    %761 = vmatprep.subr.bf16.mxu0 0
    %762 = vmatpush1.bf16.msra.mxu0 %v584
    %763 = vmatprep.subr.bf16.mxu0 0
    %764 = vmatpush1.bf16.msra.mxu0 %v585
    %765 = vmatprep.subr.bf16.mxu0 0
    %766 = vmatpush1.bf16.msra.mxu0 %v586
    %767 = vmatprep.subr.bf16.mxu0 0
    %768 = vmatpush1.bf16.msra.mxu0 %v587
    %769 = vmatprep.subr.bf16.mxu0 0
    %770 = vmatpush1.bf16.msra.mxu0 %v588
    %771 = vmatprep.subr.bf16.mxu0 0
    %772 = vmatpush1.bf16.msra.mxu0 %v589
    %773 = vmatprep.subr.bf16.mxu0 0
    %774 = vmatpush1.bf16.msra.mxu0 %v590
    %775 = vmatprep.subr.bf16.mxu0 0
    %776 = vmatpush1.bf16.msra.mxu0 %v591
    %777 = vmatprep.subr.bf16.mxu0 0
    %778 = vmatpush1.bf16.msra.mxu0 %v592
    %779 = vmatprep.subr.bf16.mxu0 0
    %780 = vmatpush1.bf16.msra.mxu0 %v593
    %781 = vmatprep.subr.bf16.mxu0 0
    %782 = vmatpush1.bf16.msra.mxu0 %v594
    %783 = vmatprep.subr.bf16.mxu0 0
    %784 = vmatpush1.bf16.msra.mxu0 %v595
    %785 = vmatprep.subr.bf16.mxu0 0
    %786 = vmatpush1.bf16.msra.mxu0 %v596
    %787 = vmatprep.subr.bf16.mxu0 0
    %788 = vmatpush1.bf16.msra.mxu0 %v597
    %789 = vmatprep.subr.bf16.mxu0 0
    %790 = vmatpush1.bf16.msra.mxu0 %v598
    %791 = vmatprep.mubr.bf16.mxu0 %v157
    %792 = vmatmul.mubr.bf16.gmra.mrb[0].mxu0 %v156
    %v793 = vpop.f32.mrb[0].mxu0
    %v794 = vadd.f32 %v754, %v793
    %v795 = vpop.f32.mrb[0].mxu0
    %v796 = vpop.f32.mrb[0].mxu0
    %v797 = vpop.f32.mrb[0].mxu0
    %798 = vdwg.mxu0
    %799 = vmatprep.subr.bf16.mxu0 0
    %800 = vmatpush1.bf16.msra.mxu0 %v599
    %801 = vmatprep.subr.bf16.mxu0 0
    %802 = vmatpush1.bf16.msra.mxu0 %v600
    %803 = vmatprep.subr.bf16.mxu0 0
    %804 = vmatpush1.bf16.msra.mxu0 %v601
    %805 = vmatprep.subr.bf16.mxu0 0
    %806 = vmatpush1.bf16.msra.mxu0 %v602
    %807 = vmatprep.subr.bf16.mxu0 0
    %808 = vmatpush1.bf16.msra.mxu0 %v603
    %809 = vmatprep.subr.bf16.mxu0 0
    %810 = vmatpush1.bf16.msra.mxu0 %v604
    %811 = vmatprep.subr.bf16.mxu0 0
    %812 = vmatpush1.bf16.msra.mxu0 %v605
    %813 = vmatprep.subr.bf16.mxu0 0
    %814 = vmatpush1.bf16.msra.mxu0 %v606
    %815 = vmatprep.subr.bf16.mxu0 0
    %816 = vmatpush1.bf16.msra.mxu0 %v607
    %817 = vmatprep.subr.bf16.mxu0 0
    %818 = vmatpush1.bf16.msra.mxu0 %v608
    %819 = vmatprep.subr.bf16.mxu0 0
    %820 = vmatpush1.bf16.msra.mxu0 %v609
    %821 = vmatprep.subr.bf16.mxu0 0
    %822 = vmatpush1.bf16.msra.mxu0 %v610
    %823 = vmatprep.subr.bf16.mxu0 0
    %824 = vmatpush1.bf16.msra.mxu0 %v611
    %825 = vmatprep.subr.bf16.mxu0 0
    %826 = vmatpush1.bf16.msra.mxu0 %v612
    %827 = vmatprep.subr.bf16.mxu0 0
    %828 = vmatpush1.bf16.msra.mxu0 %v613
    %829 = vmatprep.subr.bf16.mxu0 0
    %830 = vmatpush1.bf16.msra.mxu0 %v614
    %831 = vmatprep.mubr.bf16.mxu0 %v159
    %832 = vmatmul.mubr.bf16.gmra.mrb[0].mxu0 %v158
    %v833 = vpop.f32.mrb[0].mxu0
    %v834 = vadd.f32 %v794, %v833
    %v835 = vpop.f32.mrb[0].mxu0
    %v836 = vpop.f32.mrb[0].mxu0
    %v837 = vpop.f32.mrb[0].mxu0
    %838 = vdwg.mxu0
    %v839 = vmax.f32 %v834, 0.0
    %v840 = vpack.c.bf16 %v839, %v839
    %v841 = vld [vmem:[%s3] sm:$0xf]
    %v842 = vld [vmem:[%s3 + $0x4] sm:$0xf]
    %v843 = vld [vmem:[%s3 + $0x8] sm:$0xf]
    %v844 = vld [vmem:[%s3 + $0xc] sm:$0xf]
    %v845 = vld [vmem:[%s3 + $0x10] sm:$0xf]
    %v846 = vld [vmem:[%s3 + $0x14] sm:$0xf]
    %v847 = vld [vmem:[%s3 + $0x18] sm:$0xf]
    %v848 = vld [vmem:[%s3 + $0x1c] sm:$0xf]
    %v849 = vld [vmem:[%s3 + $0x20] sm:$0xf]
    %v850 = vld [vmem:[%s3 + $0x24] sm:$0xf]
    %v851 = vld [vmem:[%s3 + $0x28] sm:$0xf]
    %v852 = vld [vmem:[%s3 + $0x2c] sm:$0xf]
    %v853 = vld [vmem:[%s3 + $0x30] sm:$0xf]
    %v854 = vld [vmem:[%s3 + $0x34] sm:$0xf]
    %v855 = vld [vmem:[%s3 + $0x38] sm:$0xf]
    %v856 = vld [vmem:[%s3 + $0x3c] sm:$0xf]
    %v857 = vld [vmem:[%s4] sm:$0x1]
    %v859 = vlaneseq
    %v860 = vshrl.u32 %v859, 7
    %v861 = vsub.s32 0, %v860
    %v862 = vrot.slane %v857, %v861
    %v880 = vunpack.c.l.b16 %v841
    %v881 = vunpack.c.l.b16 %v842
    %v882 = vunpack.c.l.b16 %v843
    %v883 = vunpack.c.l.b16 %v844
    %v884 = vunpack.c.l.b16 %v845
    %v885 = vunpack.c.l.b16 %v846
    %v886 = vunpack.c.l.b16 %v847
    %v887 = vunpack.c.l.b16 %v848
    %v888 = vunpack.c.l.b16 %v849
    %v889 = vunpack.c.l.b16 %v850
    %v890 = vunpack.c.l.b16 %v851
    %v891 = vunpack.c.l.b16 %v852
    %v892 = vunpack.c.l.b16 %v853
    %v893 = vunpack.c.l.b16 %v854
    %v894 = vunpack.c.l.b16 %v855
    %v895 = vunpack.c.l.b16 %v856
    %v896 = vpack.c.b16 %v881, %v880
    %v897 = vpack.c.b16 %v883, %v882
    %v898 = vpack.c.b16 %v885, %v884
    %v899 = vpack.c.b16 %v887, %v886
    %v900 = vpack.c.b16 %v889, %v888
    %v901 = vpack.c.b16 %v891, %v890
    %v902 = vpack.c.b16 %v893, %v892
    %v903 = vpack.c.b16 %v895, %v894
    %912 = vmatprep.subr.bf16.mxu0 0
    %913 = vmatpush1.bf16.msra.mxu0 %v896
    %914 = vmatprep.subr.bf16.mxu0 0
    %915 = vmatpush1.bf16.msra.mxu0 %v897
    %916 = vmatprep.subr.bf16.mxu0 0
    %917 = vmatpush1.bf16.msra.mxu0 %v898
    %918 = vmatprep.subr.bf16.mxu0 0
    %919 = vmatpush1.bf16.msra.mxu0 %v899
    %920 = vmatprep.subr.bf16.mxu0 0
    %921 = vmatpush1.bf16.msra.mxu0 %v900
    %922 = vmatprep.subr.bf16.mxu0 0
    %923 = vmatpush1.bf16.msra.mxu0 %v901
    %924 = vmatprep.subr.bf16.mxu0 0
    %925 = vmatpush1.bf16.msra.mxu0 %v902
    %926 = vmatprep.subr.bf16.mxu0 0
    %927 = vmatpush1.bf16.msra.mxu0 %v903
    %928 = vmatprep.subr.bf16.mxu0 0
    %929 = vmatpush1.bf16.msra.mxu0 0
    %930 = vmatprep.subr.bf16.mxu0 0
    %931 = vmatpush1.bf16.msra.mxu0 0
    %932 = vmatprep.subr.bf16.mxu0 0
    %933 = vmatpush1.bf16.msra.mxu0 0
    %934 = vmatprep.subr.bf16.mxu0 0
    %935 = vmatpush1.bf16.msra.mxu0 0
    %936 = vmatprep.subr.bf16.mxu0 0
    %937 = vmatpush1.bf16.msra.mxu0 0
    %938 = vmatprep.subr.bf16.mxu0 0
    %939 = vmatpush1.bf16.msra.mxu0 0
    %940 = vmatprep.subr.bf16.mxu0 0
    %941 = vmatpush1.bf16.msra.mxu0 0
    %942 = vmatprep.subr.bf16.mxu0 0
    %943 = vmatpush1.bf16.msra.mxu0 0
    %944 = vmatprep.mubr.bf16.mxu0 0
    %945 = vmatmul.mubr.bf16.gmra.mrb[0].mxu0 %v840
    %v946 = vpop.f32.mrb[0].mxu0
    %v947 = vadd.f32 %v862, %v946
    %v948 = vpop.f32.mrb[0].mxu0
    %v949 = vpop.f32.mrb[0].mxu0
    %v950 = vpop.f32.mrb[0].mxu0
    %951 = vdwg.mxu0
    %v952 = vmax.f32 %v947, 0.0
    %v953 = vpack.c.bf16 %v952, %v952
    %v954 = vld [vmem:[%s5] sm:$0xf]
    %v955 = vld [vmem:[%s5 + $0x4] sm:$0xf]
    %v956 = vld [vmem:[%s5 + $0x8] sm:$0xf]
    %v957 = vld [vmem:[%s5 + $0xc] sm:$0xf]
    %v958 = vld [vmem:[%s5 + $0x10] sm:$0xf]
    %v959 = vld [vmem:[%s5 + $0x14] sm:$0xf]
    %v960 = vld [vmem:[%s5 + $0x18] sm:$0xf]
    %v961 = vld [vmem:[%s5 + $0x1c] sm:$0xf]
    %v962 = vld [vmem:[%s5 + $0x20] sm:$0xf]
    %v963 = vld [vmem:[%s5 + $0x24] sm:$0xf]
    %v964 = vld [vmem:[%s5 + $0x28] sm:$0xf]
    %v965 = vld [vmem:[%s5 + $0x2c] sm:$0xf]
    %v966 = vld [vmem:[%s5 + $0x30] sm:$0xf]
    %v967 = vld [vmem:[%s5 + $0x34] sm:$0xf]
    %v968 = vld [vmem:[%s5 + $0x38] sm:$0xf]
    %v969 = vld [vmem:[%s5 + $0x3c] sm:$0xf]
    %v970 = vld [vmem:[%s6] sm:$0x1]
    %v972 = vlaneseq
    %v973 = vshrl.u32 %v972, 7
    %v974 = vsub.s32 0, %v973
    %v975 = vrot.slane %v970, %v974
    %v993 = vunpack.c.l.b16 %v954
    %v994 = vunpack.c.l.b16 %v955
    %v995 = vunpack.c.l.b16 %v956
    %v996 = vunpack.c.l.b16 %v957
    %v997 = vunpack.c.l.b16 %v958
    %v998 = vunpack.c.l.b16 %v959
    %v999 = vunpack.c.l.b16 %v960
    %v1000 = vunpack.c.l.b16 %v961
    %v1001 = vunpack.c.l.b16 %v962
    %v1002 = vunpack.c.l.b16 %v963
    %v1003 = vunpack.c.l.b16 %v964
    %v1004 = vunpack.c.l.b16 %v965
    %v1005 = vunpack.c.l.b16 %v966
    %v1006 = vunpack.c.l.b16 %v967
    %v1007 = vunpack.c.l.b16 %v968
    %v1008 = vunpack.c.l.b16 %v969
    %v1009 = vpack.c.b16 %v994, %v993
    %v1010 = vpack.c.b16 %v996, %v995
    %v1011 = vpack.c.b16 %v998, %v997
    %v1012 = vpack.c.b16 %v1000, %v999
    %v1013 = vpack.c.b16 %v1002, %v1001
    %v1014 = vpack.c.b16 %v1004, %v1003
    %v1015 = vpack.c.b16 %v1006, %v1005
    %v1016 = vpack.c.b16 %v1008, %v1007
    %1025 = vmatprep.subr.bf16.mxu0 0
    %1026 = vmatpush1.bf16.msra.mxu0 %v1009
    %1027 = vmatprep.subr.bf16.mxu0 0
    %1028 = vmatpush1.bf16.msra.mxu0 %v1010
    %1029 = vmatprep.subr.bf16.mxu0 0
    %1030 = vmatpush1.bf16.msra.mxu0 %v1011
    %1031 = vmatprep.subr.bf16.mxu0 0
    %1032 = vmatpush1.bf16.msra.mxu0 %v1012
    %1033 = vmatprep.subr.bf16.mxu0 0
    %1034 = vmatpush1.bf16.msra.mxu0 %v1013
    %1035 = vmatprep.subr.bf16.mxu0 0
    %1036 = vmatpush1.bf16.msra.mxu0 %v1014
    %1037 = vmatprep.subr.bf16.mxu0 0
    %1038 = vmatpush1.bf16.msra.mxu0 %v1015
    %1039 = vmatprep.subr.bf16.mxu0 0
    %1040 = vmatpush1.bf16.msra.mxu0 %v1016
    %1041 = vmatprep.subr.bf16.mxu0 0
    %1042 = vmatpush1.bf16.msra.mxu0 0
    %1043 = vmatprep.subr.bf16.mxu0 0
    %1044 = vmatpush1.bf16.msra.mxu0 0
    %1045 = vmatprep.subr.bf16.mxu0 0
    %1046 = vmatpush1.bf16.msra.mxu0 0
    %1047 = vmatprep.subr.bf16.mxu0 0
    %1048 = vmatpush1.bf16.msra.mxu0 0
    %1049 = vmatprep.subr.bf16.mxu0 0
    %1050 = vmatpush1.bf16.msra.mxu0 0
    %1051 = vmatprep.subr.bf16.mxu0 0
    %1052 = vmatpush1.bf16.msra.mxu0 0
    %1053 = vmatprep.subr.bf16.mxu0 0
    %1054 = vmatpush1.bf16.msra.mxu0 0
    %1055 = vmatprep.subr.bf16.mxu0 0
    %1056 = vmatpush1.bf16.msra.mxu0 0
    %1057 = vmatprep.mubr.bf16.mxu0 0
    %1058 = vmatmul.mubr.bf16.gmra.mrb[0].mxu0 %v953
    %v1059 = vpop.f32.mrb[0].mxu0
    %v1060 = vadd.f32 %v975, %v1059
    %v1061 = vpop.f32.mrb[0].mxu0
    %v1062 = vpop.f32.mrb[0].mxu0
    %v1063 = vpop.f32.mrb[0].mxu0
    %1064 = vdwg.mxu0
    %v1065 = vmax.f32 %v1060, 0.0
    %vm1066 = vcmask 64512
    %1067 = vst.msk [vmem:[#allocation7] sm:$0xff] %vm1066, %v1065
    // Predicated region
    $region38: #{tpu_custom_call.1} parent=1 // pred_check
      _
    $region39: #{tpu_custom_call.1} parent=1 // pred_check_branch
      %1069 = sbr.rel (0) target = $region41
    $region40: #{tpu_custom_call.1} parent=1 // pred_region
      %s1071 = ssub.s32 128, 32
      %1072 = vsyncadd [#allocation4], %s1071
      %s1073 = sshll.u32 [#allocation7], 4
      %s1074 = int_to_ptr.vmem [resolvable:$true] %s1073
      %1079 = dma.vmem_to_hbm [thread:$0]  %s1074, 32, %s7, [#allocation4], 32, 32, 2
    $region41: #{tpu_custom_call.1} parent=1 // pred_fallthru
      _
    // Predicated region
    $region42: #{tpu_custom_call.1} parent=1 // pred_check
      _
    $region43: #{tpu_custom_call.1} parent=1 // pred_check_branch
      %1081 = sbr.rel (0) target = $region45
    $region44: #{tpu_custom_call.1} parent=1 // pred_region
      %1082 = dma.done [#allocation4], 128
    $region45: #{tpu_custom_call.1} parent=1 // pred_fallthru
      _
    %1083 = vsyncpa [#allocation3], 1
    %1084 = vsyncpa [#allocation6], 1
    %1085 = vsyncpa [#allocation4], 1

</llo_original>
